<compile_context>
chip_gen: v7x
topology: tpu7x:2x2x1
jax: 0.10.0
libtpu: 0.0.40
codegen_flags: <defaults>
</compile_context>

<pallas_src>
import jax
import jax.numpy as jnp
from jax.experimental import pallas as pl
from jax.experimental.pallas import tpu as pltpu


def _loss_l1_kernel(y_ref, mu_ref, a_ref, o_ref):
    # (B, K*D) residual; the folded contraction axis sits on lanes -> dense VPU sub.
    diff = y_ref[...] - mu_ref[...]
    # Single MXU push: (B, K*D) @ (K*D, M) -> (B, M). M on the lane axis keeps
    # the epilogue (abs + full reduce) lane-dense.
    out_t = jnp.dot(diff, a_ref[...], preferred_element_type=jnp.float32)
    # Scalar L1 mean straight to SMEM.
    o_ref[0] = jnp.sum(jnp.abs(out_t)) * (1.0 / out_t.size)


def loss_l1(d_top, v_inv, y, mu):
    """d_top: (K,M,D), v_inv: (K,D,D), y/mu: (K,D,B). Returns scalar f32 loss."""
    K, M, D = d_top.shape
    B = y.shape[-1]

    # Parameter-only precompute (d_top, v_inv are module constants):
    #   A_t[k*D + e, m] = sum_d d_top[k, m, d] * v_inv[k, d, e]
    a_t = (
        jnp.einsum("kmd,kde->kem", d_top, v_inv,
                   precision=jax.lax.Precision.HIGHEST)
        .reshape(K * D, M)
        .astype(jnp.float32)
    )

    # Layout plumbing only (no compute hoisted): put the folded K*D contraction
    # axis on the 128-lane axis of the runtime inputs.
    y_t = jnp.transpose(y, (2, 0, 1)).reshape(B, K * D)
    mu_t = jnp.transpose(mu, (2, 0, 1)).reshape(B, K * D)

    out = pl.pallas_call(
        _loss_l1_kernel,
        out_shape=jax.ShapeDtypeStruct((1,), jnp.float32),
        in_specs=[
            pl.BlockSpec(memory_space=pltpu.MemorySpace.VMEM),  # y_t   (B, K*D)
            pl.BlockSpec(memory_space=pltpu.MemorySpace.VMEM),  # mu_t  (B, K*D)
            pl.BlockSpec(memory_space=pltpu.MemorySpace.VMEM),  # a_t   (K*D, M)
        ],
        out_specs=pl.BlockSpec(memory_space=pltpu.MemorySpace.SMEM),
    )(y_t, mu_t, a_t)
    return out[0]


if __name__ == "__main__":
    # Deterministic synthetic parameters / inputs (module __init__ stores d_top, v_inv).
    key = jax.random.PRNGKey(0)
    K, M, D, B = 3, 32, 16, 8
    k1, k2, k3, k4 = jax.random.split(key, 4)
    d_top = jax.random.normal(k1, (K, M, D), dtype=jnp.float32)
    v_inv = jax.random.normal(k2, (K, D, D), dtype=jnp.float32)
    y = jax.random.normal(k3, (K, D, B), dtype=jnp.float32)
    mu = jax.random.normal(k4, (K, D, B), dtype=jnp.float32)

    loss = jax.block_until_ready(loss_l1(d_top, v_inv, y, mu))

    # Pure-JAX reference with the ORIGINAL module's association:
    #   (d_top[k] @ v_inv[k]) @ (y[k] - mu[k]), summed over k, then mean(abs).
    hp = jax.lax.Precision.HIGHEST
    ref_out = jnp.zeros((M, B), jnp.float32)
    for k in range(K):
        dv = jnp.matmul(d_top[k], v_inv[k], precision=hp)
        ref_out = ref_out + jnp.matmul(dv, y[k] - mu[k], precision=hp)
    ref = jnp.mean(jnp.abs(ref_out))
    assert jnp.allclose(loss, ref, rtol=1e-4, atol=1e-4), (loss, ref)

    print("KERNEL_OK")
</pallas_src>

<mosaic_0001>
module attributes {stable_mosaic.version = 11 : i64} {
  func.func @_loss_l1_kernel(%arg0: memref<8x48xf32, #tpu.memory_space<vmem>>, %arg1: memref<8x48xf32, #tpu.memory_space<vmem>>, %arg2: memref<48x32xf32, #tpu.memory_space<vmem>>, %arg3: memref<1xf32, #tpu.memory_space<smem>>) attributes {dimension_semantics = [], scalar_prefetch = 0 : i64, scratch_operands = 0 : i64, tpu.core_type = #tpu.core_type<tc>} {
    %c0 = arith.constant 0 : index
    %c0_0 = arith.constant 0 : index
    %0 = vector.load %arg0[%c0, %c0_0] : memref<8x48xf32, #tpu.memory_space<vmem>>, vector<8x48xf32>
    %c0_1 = arith.constant 0 : index
    %c0_2 = arith.constant 0 : index
    %1 = vector.load %arg1[%c0_1, %c0_2] : memref<8x48xf32, #tpu.memory_space<vmem>>, vector<8x48xf32>
    %2 = arith.subf %0, %1 : vector<8x48xf32>
    %c0_3 = arith.constant 0 : index
    %c0_4 = arith.constant 0 : index
    %3 = vector.load %arg2[%c0_3, %c0_4] : memref<48x32xf32, #tpu.memory_space<vmem>>, vector<48x32xf32>
    %cst = arith.constant dense<0.000000e+00> : vector<8x32xf32>
    %4 = tpu.matmul %2, %3, %cst {dimension_numbers = #tpu.dot_dimension_numbers<[1], [0], [0], [1], [0, 0, 1, 1], [], []>} : vector<8x48xf32>, vector<48x32xf32>, vector<8x32xf32> -> vector<8x32xf32>
    %5 = math.absf %4 : vector<8x32xf32>
    %6 = vector.shape_cast %5 : vector<8x32xf32> to vector<1x8x32xf32>
    %cst_5 = arith.constant dense<0.000000e+00> : vector<1xf32>
    %7 = vector.multi_reduction <add>, %6, %cst_5 [1, 2] : vector<1x8x32xf32> to vector<1xf32>
    %8 = vector.shape_cast %7 : vector<1xf32> to vector<1x1x1xf32>
    %9 = vector.extract %8[0, 0, 0] : f32 from vector<1x1x1xf32>
    %cst_6 = arith.constant 3.906250e-03 : f32
    %10 = arith.mulf %9, %cst_6 : f32
    %c0_7 = arith.constant 0 : index
    %11 = memref.load %arg3[%c0_7] : memref<1xf32, #tpu.memory_space<smem>>
    memref.store %10, %arg3[%c0_7] : memref<1xf32, #tpu.memory_space<smem>>
    return
  }
}

</mosaic_0001>

<llo_original>
// kernel: tpu_custom_call.1
$region0: #{tpu_custom_call.1}
  #allocation0 [shape = 'u32[]', space=smem, size = 0x4, offset = 0x4, fixed_abs, tag = 'smem constant byte address 0x4 - core index']
  #allocation1 [shape = 'u32[144,128]{1,0:T(1,128)}', space=vmem, size = 0x12000, scoped, tag = 'internal scratch']
  %s0 = inlined_call_operand.vmem [shape: f32[8,48], index: 0, kind: input, shape index: {}]
  %s1 = inlined_call_operand.vmem [shape: f32[8,48], index: 1, kind: input, shape index: {}]
  %s2 = inlined_call_operand.vmem [shape: f32[48,32], index: 2, kind: input, shape index: {}]
  %s3 = inlined_call_operand.hbm [shape: f32[1], index: 3, kind: output, shape index: {}]
  %s4 = sld [smem:[#allocation0]]
  $region22: #{tpu_custom_call.1} parent=0
    _
  %s6 = ssub.s32 1, %s4
  %s7 = scalar_select 0, %s6, %s4
  $region1: #{tpu_custom_call.1} parent=0
    #allocation2 [shape = 'u8[512]{0}', space=smem, size = 0x200, scoped, tag = 'output window, operand 0, single buffered']
    #allocation3 [shape = 's32[1]{0}', space=sflag, size = 0x4, scoped, tag = 'scoped memory for tpu_custom_call.1']
    %8 = vsyncpa [#allocation3], 0
    // Predicated region
    $region2: #{tpu_custom_call.1} parent=1 // pred_check
      _
    $region3: #{tpu_custom_call.1} parent=1 // pred_check_branch
      %10 = sbr.rel (0) target = $region5
    $region4: #{tpu_custom_call.1} parent=1 // pred_region
      _
    $region5: #{tpu_custom_call.1} parent=1 // pred_fallthru
      _
    // Predicated region
    $region6: #{tpu_custom_call.1} parent=1 // pred_check
      _
    $region7: #{tpu_custom_call.1} parent=1 // pred_check_branch
      %12 = sbr.rel (0) target = $region9
    $region8: #{tpu_custom_call.1} parent=1 // pred_region
      _
    $region9: #{tpu_custom_call.1} parent=1 // pred_fallthru
      _
    // Predicated region
    $region10: #{tpu_custom_call.1} parent=1 // pred_check
      _
    $region11: #{tpu_custom_call.1} parent=1 // pred_check_branch
      %14 = sbr.rel (0) target = $region13
    $region12: #{tpu_custom_call.1} parent=1 // pred_region
      _
    $region13: #{tpu_custom_call.1} parent=1 // pred_fallthru
      _
    %v15 = vld [vmem:[%s0] sm:$0xff]
    %v16 = vld [vmem:[%s1] sm:$0xff]
    %v17 = vsub.f32 %v15, %v16
    %v18 = vld [vmem:[%s2] sm:$0xff]
    %v19 = vld [vmem:[%s2 + $0x8] sm:$0xff]
    %v20 = vld [vmem:[%s2 + $0x10] sm:$0xff]
    %v21 = vld [vmem:[%s2 + $0x18] sm:$0xff]
    %v22 = vld [vmem:[%s2 + $0x20] sm:$0xff]
    %v23 = vld [vmem:[%s2 + $0x28] sm:$0xff]
    %vm24 = vcmask 392192
    %v26 = vsel %vm24, %v17, 0
    %28 = vmatprep.subr.mxu0 0.0
    %29 = vmatpush1.msra.mxu0 %v18
    %30 = vmatprep.subr.mxu0 0.0
    %31 = vmatpush1.msra.mxu0 %v19
    %32 = vmatprep.subr.mxu0 0.0
    %33 = vmatpush1.msra.mxu0 %v20
    %34 = vmatprep.subr.mxu0 0.0
    %35 = vmatpush1.msra.mxu0 %v21
    %36 = vmatprep.subr.mxu0 0.0
    %37 = vmatpush1.msra.mxu0 %v22
    %38 = vmatprep.subr.mxu0 0.0
    %39 = vmatpush1.msra.mxu0 %v23
    %40 = vmatprep.subr.mxu0 0.0
    %41 = vmatpush1.msra.mxu0 0.0
    %42 = vmatprep.subr.mxu0 0.0
    %43 = vmatpush1.msra.mxu0 0.0
    %44 = vmatprep.subr.mxu0 0.0
    %45 = vmatpush1.msra.mxu0 0.0
    %46 = vmatprep.subr.mxu0 0.0
    %47 = vmatpush1.msra.mxu0 0.0
    %48 = vmatprep.subr.mxu0 0.0
    %49 = vmatpush1.msra.mxu0 0.0
    %50 = vmatprep.subr.mxu0 0.0
    %51 = vmatpush1.msra.mxu0 0.0
    %52 = vmatprep.subr.mxu0 0.0
    %53 = vmatpush1.msra.mxu0 0.0
    %54 = vmatprep.subr.mxu0 0.0
    %55 = vmatpush1.msra.mxu0 0.0
    %56 = vmatprep.subr.mxu0 0.0
    %57 = vmatpush1.msra.mxu0 0.0
    %58 = vmatprep.subr.mxu0 0.0
    %59 = vmatpush1.msra.mxu0 0.0
    %60 = vmatprep.subr.mxu0 0.0
    %61 = vmatpush1.msra.mxu0 0.0
    %62 = vmatprep.subr.mxu0 0.0
    %63 = vmatpush1.msra.mxu0 0.0
    %64 = vmatprep.subr.mxu0 0.0
    %65 = vmatpush1.msra.mxu0 0.0
    %66 = vmatprep.subr.mxu0 0.0
    %67 = vmatpush1.msra.mxu0 0.0
    %68 = vmatprep.subr.mxu0 0.0
    %69 = vmatpush1.msra.mxu0 0.0
    %70 = vmatprep.subr.mxu0 0.0
    %71 = vmatpush1.msra.mxu0 0.0
    %72 = vmatprep.subr.mxu0 0.0
    %73 = vmatpush1.msra.mxu0 0.0
    %74 = vmatprep.subr.mxu0 0.0
    %75 = vmatpush1.msra.mxu0 0.0
    %76 = vmatprep.subr.mxu0 0.0
    %77 = vmatpush1.msra.mxu0 0.0
    %78 = vmatprep.subr.mxu0 0.0
    %79 = vmatpush1.msra.mxu0 0.0
    %80 = vmatprep.subr.mxu0 0.0
    %81 = vmatpush1.msra.mxu0 0.0
    %82 = vmatprep.subr.mxu0 0.0
    %83 = vmatpush1.msra.mxu0 0.0
    %84 = vmatprep.subr.mxu0 0.0
    %85 = vmatpush1.msra.mxu0 0.0
    %86 = vmatprep.subr.mxu0 0.0
    %87 = vmatpush1.msra.mxu0 0.0
    %88 = vmatprep.subr.mxu0 0.0
    %89 = vmatpush1.msra.mxu0 0.0
    %90 = vmatprep.subr.mxu0 0.0
    %91 = vmatpush1.msra.mxu0 0.0
    %92 = vmatprep.mubr.f32.mxu0 0.0
    %93 = vmatmul.mubr.f32.gmra.mrb[0].mxu0 %v26
    %v94 = vpop.f32.mrb[0].mxu0
    %v95 = vadd.f32 0.0, %v94
    %v96 = vpop.f32.mrb[0].mxu0
    %97 = vdwg.mxu0
    %v98 = vand.u32 2147483647, %v95
    %vm99 = vcmask 261120
    %v100 = vsel %vm99, %v98, 0.0
    %101 = vadd.xlane.f32.xlu0 %v100
    %v102 = vpop.xlane.xlu0 %101
    %v103 = vrot.slane %v102, 4
    %v104 = vadd.f32 %v102, %v103
    %v105 = vrot.slane %v104, 2
    %v106 = vadd.f32 %v104, %v105
    %v107 = vrot.slane %v106, 1
    %v108 = vadd.f32 %v106, %v107
    %s109 = vtos %v108
    %s110 = smul.f32 %s109, 0.00390625
    %s111 = scalar_lea.smem [#allocation2], 0
    %112 = sst [smem:[%s111]] %s110
    // Predicated region
    $region14: #{tpu_custom_call.1} parent=1 // pred_check
      _
    $region15: #{tpu_custom_call.1} parent=1 // pred_check_branch
      %114 = sbr.rel (0) target = $region17
    $region16: #{tpu_custom_call.1} parent=1 // pred_region
      %s116 = ssub.s32 16, 16
      %117 = vsyncadd [#allocation3], %s116
      %120 = dma.smem_to_hbm [#allocation2], 16, %s3, [#allocation3]
    $region17: #{tpu_custom_call.1} parent=1 // pred_fallthru
      _
    // Predicated region
    $region18: #{tpu_custom_call.1} parent=1 // pred_check
      _
    $region19: #{tpu_custom_call.1} parent=1 // pred_check_branch
      %122 = sbr.rel (0) target = $region21
    $region20: #{tpu_custom_call.1} parent=1 // pred_region
      %123 = dma.done [#allocation3], 16
    $region21: #{tpu_custom_call.1} parent=1 // pred_fallthru
      _
    %124 = sfence
    %125 = vsyncpa [#allocation3], 1

</llo_original>
